<compile_context>
chip_gen: v7x
topology: tpu7x:2x2x1
jax: 0.10.0
libtpu: 0.0.40
codegen_flags: <defaults>
</compile_context>

<pallas_src>
import functools

import jax
import jax.numpy as jnp
from jax.experimental import pallas as pl
from jax.experimental.pallas import tpu as pltpu

_MiB = 1024 * 1024


def _vmem_capacity_bytes():
    """Physical VMEM per TensorCore; conservative fallback = v7x (64 MiB)."""
    try:
        info = pltpu.get_tpu_info()
        for attr in ("vmem_capacity_bytes", "vmem_bytes", "vmem_size_bytes"):
            v = getattr(info, attr, None)
            if v:
                return int(v)
    except Exception:
        pass
    return 64 * _MiB


def _pick_batch_tile(batch, per_batch_bytes, target_bytes):
    """Largest divisor d of `batch` with d*per_batch <= target and grid len >= 2."""
    best = 1
    for d in range(1, batch + 1):
        if batch % d:
            continue
        if d * per_batch_bytes > target_bytes:
            break
        if batch >= 2 and batch // d < 2:
            break  # keep >=2 parallel grid steps so both v7x cores get work
        best = d
    return best


# ---------------------------------------------------------------------------
# Fused kernel: one (b_tile, C, HW) slab resident in VMEM per grid step.
# ---------------------------------------------------------------------------
def _eca_fused_kernel(x_ref, wT_ref, o_ref, *, b_const):
    # x_ref : (b_tile, C, HW)  activations, native dtype
    # wT_ref: (C, C)           f32 transposed center-tap conv weight, wT[ic, oc]
    # o_ref : (b_tile, C, HW)
    #
    # NOTE: x_ref is re-read from VMEM for the final multiply instead of
    # keeping one multi-MiB SSA value live across reduce -> matmul -> sigmoid
    # (keeps vreg pressure low; VMEM re-loads are free relative to HBM DMA).
    y = jnp.mean(x_ref[...], axis=-1, dtype=jnp.float32)               # (bt, C)
    z = jnp.dot(y, wT_ref[...], preferred_element_type=jnp.float32)    # (bt, C)
    scale = (b_const + jax.nn.sigmoid(z)).astype(o_ref.dtype)          # (bt, C)
    o_ref[...] = x_ref[...] * scale[:, :, None]


# ---------------------------------------------------------------------------
# Fallback kernel: pure tiled broadcast-multiply (scale precomputed in wrapper).
# ---------------------------------------------------------------------------
def _eca_scale_kernel(x_ref, s_ref, o_ref):
    # x_ref : (bt, C, hw_tile)   activation tile, native dtype
    # s_ref : (bt, C, 1)         per-(batch, channel) scale = b + sigmoid(z)
    o_ref[...] = x_ref[...] * s_ref[...]


def eca_forward(x, conv_weight, *, b=1.0, max_fused_block_bytes=None, hw_tile=None):
    """ECA forward.

    x           : (B, C, H, W) float array (NCHW, as in PyTorch)
    conv_weight : (C, C, k)    Conv1d weight (out_ch, in_ch, kernel), no bias
    """
    B, C, H, W = x.shape
    HW = H * W
    k = conv_weight.shape[-1]
    mid = (k - 1) // 2

    # Only the center tap ever touches the length-1 pooled sequence (exact).
    wT = jnp.transpose(conv_weight[:, :, mid]).astype(jnp.float32)     # (C_in, C_out)
    weight_bytes = C * C * 4

    x_flat = x.reshape(B, C, HW)
    dsize = x.dtype.itemsize
    per_batch_bytes = C * HW * dsize

    # --- Generation-aware budgets --------------------------------------------
    vmem_cap = _vmem_capacity_bytes()
    usable = int(vmem_cap * 0.75)              # 4x block + weight must fit here
    # Per-grid-step DMA granularity target: ~2 MiB on 64 MiB parts (v7x),
    # ~4 MiB on 128 MiB parts (v5e / v6e).
    step_target = 2 * _MiB if vmem_cap <= 64 * _MiB else 4 * _MiB

    if max_fused_block_bytes is None:
        # 2x(in block) + 2x(out block) + resident weight + headroom <= usable.
        max_fused_block_bytes = max(_MiB, (usable - weight_bytes - 2 * _MiB) // 4)

    # --- Fused path: one (b_tile, C, HW) slab per grid step -------------------
    if per_batch_bytes <= max_fused_block_bytes:
        b_tile = _pick_batch_tile(B, per_batch_bytes,
                                  min(step_target, max_fused_block_bytes))
        n_b = B // b_tile
        block_bytes = b_tile * per_batch_bytes
        vmem_limit = int(min(vmem_cap - 2 * _MiB,
                             max(32 * _MiB,
                                 4 * block_bytes + weight_bytes + 4 * _MiB)))
        cost = pl.CostEstimate(
            flops=2 * B * C * HW + 2 * B * C * C,
            transcendentals=B * C,
            bytes_accessed=2 * B * C * HW * dsize + weight_bytes)
        # TODO(synk): if B == 1 on v7x the length-1 parallel grid uses a single
        # TensorCore; splitting only the multiply phase over HW would need an
        # extra pass, so we keep the 2-HBM-pass fused form.
        out_flat = pl.pallas_call(
            functools.partial(_eca_fused_kernel, b_const=float(b)),
            out_shape=jax.ShapeDtypeStruct((B, C, HW), x.dtype),
            grid=(n_b,),
            in_specs=[
                pl.BlockSpec((b_tile, C, HW), lambda bi: (bi, 0, 0)),
                # Constant block index -> weight stays resident, no re-DMA.
                pl.BlockSpec((C, C), lambda bi: (0, 0)),
            ],
            out_specs=pl.BlockSpec((b_tile, C, HW), lambda bi: (bi, 0, 0)),
            compiler_params=pltpu.CompilerParams(
                dimension_semantics=("parallel",),
                vmem_limit_bytes=vmem_limit),
            cost_estimate=cost,
        )(x_flat, wT)
        return out_flat.reshape(B, C, H, W)

    # --- Two-pass path (per-batch slab too large for the fused budget) --------
    # (1) pooled mean + matmul + sigmoid in the wrapper: <1% of the HBM traffic.
    y = jnp.mean(x_flat, axis=-1, dtype=jnp.float32)                   # (B, C)
    z = jnp.dot(y, wT, preferred_element_type=jnp.float32)             # (B, C)
    scale = (float(b) + jax.nn.sigmoid(z)).astype(x.dtype).reshape(B, C, 1)

    cost = pl.CostEstimate(
        flops=B * C * HW,
        transcendentals=0,
        bytes_accessed=2 * B * C * HW * dsize + B * C * dsize)

    # (2a) small per-batch slabs: fold batches so each grid step moves ~target.
    if per_batch_bytes <= _MiB and hw_tile is None:
        b_tile = _pick_batch_tile(B, per_batch_bytes, step_target)
        block_bytes = b_tile * per_batch_bytes
        vmem_limit = int(min(vmem_cap - 2 * _MiB,
                             max(32 * _MiB, 4 * block_bytes + 4 * _MiB)))
        out_flat = pl.pallas_call(
            _eca_scale_kernel,
            out_shape=jax.ShapeDtypeStruct((B, C, HW), x.dtype),
            grid=(B // b_tile,),
            in_specs=[
                pl.BlockSpec((b_tile, C, HW), lambda bi: (bi, 0, 0)),
                pl.BlockSpec((b_tile, C, 1), lambda bi: (bi, 0, 0)),
            ],
            out_specs=pl.BlockSpec((b_tile, C, HW), lambda bi: (bi, 0, 0)),
            compiler_params=pltpu.CompilerParams(
                dimension_semantics=("parallel",),
                vmem_limit_bytes=vmem_limit),
            cost_estimate=cost,
        )(x_flat, scale)
        return out_flat.reshape(B, C, H, W)

    # (2b) large slabs: lane-dense HW tiling over a (B, n_hw) grid.
    if hw_tile is None:
        hw_tile = max(128, (step_target // (C * dsize)) // 128 * 128)
    hw_tile = int(min(hw_tile, HW))
    if hw_tile < HW:
        hw_tile = max(128, (hw_tile // 128) * 128)
    n_hw = pl.cdiv(HW, hw_tile)
    block_bytes = C * hw_tile * dsize
    vmem_limit = int(min(vmem_cap - 2 * _MiB,
                         max(32 * _MiB, 4 * block_bytes + 4 * _MiB)))
    # TODO(synk): if C ever gets large enough that (C, 128) alone overflows
    # VMEM, add a channel-tile grid axis as well (not needed for ECA's sizes).
    out_flat = pl.pallas_call(
        _eca_scale_kernel,
        out_shape=jax.ShapeDtypeStruct((B, C, HW), x.dtype),
        grid=(B, n_hw),
        in_specs=[
            pl.BlockSpec((1, C, hw_tile), lambda bi, hi: (bi, 0, hi)),
            pl.BlockSpec((1, C, 1), lambda bi, hi: (bi, 0, 0)),
        ],
        out_specs=pl.BlockSpec((1, C, hw_tile), lambda bi, hi: (bi, 0, hi)),
        compiler_params=pltpu.CompilerParams(
            dimension_semantics=("parallel", "parallel"),
            vmem_limit_bytes=vmem_limit),
        cost_estimate=cost,
    )(x_flat, scale)
    return out_flat.reshape(B, C, H, W)


def _reference_eca(x, conv_weight, b=1.0):
    # Pure-JAX reference mirroring the PyTorch semantics.
    k = conv_weight.shape[-1]
    mid = (k - 1) // 2
    y = jnp.mean(x, axis=(2, 3))                                        # (B, C)
    z = jnp.einsum('bi,oi->bo', y, conv_weight[:, :, mid])
    s = jax.nn.sigmoid(z)
    return x * (b + s)[:, :, None, None]


if __name__ == "__main__":
    key = jax.random.PRNGKey(0)
    kx, kw = jax.random.split(key)

    # Shapes consistent with the module: gamma=2 -> kernel_size=min(3, C//2);
    # C=8 gives k=3 (odd, as the length-1 Conv1d input requires - C=4 would
    # make the PyTorch module itself produce a zero-length Conv1d output).
    B, C, H, W = 2, 8, 16, 16
    gamma, b = 2, 1
    kernel_size = min(3, max(1, C // gamma))      # = 3

    x = jax.random.normal(kx, (B, C, H, W), dtype=jnp.float32)
    conv_weight = 0.1 * jax.random.normal(kw, (C, C, kernel_size), dtype=jnp.float32)

    ref = _reference_eca(x, conv_weight, b=b)
    # Note: tolerances are for f32 activations; with bf16 inputs use bf16 eps.
    tol = 1e-5

    # Fused path (per-batch slab resident in VMEM, x read from HBM once).
    out_fused = jax.block_until_ready(eca_forward(x, conv_weight, b=b))
    assert out_fused.shape == (B, C, H, W)
    assert jnp.allclose(out_fused, ref, atol=tol, rtol=tol), "fused path mismatch"

    # Two-pass path, batch-folded variant (forced).
    out_fold = jax.block_until_ready(
        eca_forward(x, conv_weight, b=b, max_fused_block_bytes=0))
    assert jnp.allclose(out_fold, ref, atol=tol, rtol=tol), "2-pass (batch-fold) mismatch"

    # Two-pass path, lane-dense HW-tiled variant (forced).
    out_tiled = jax.block_until_ready(
        eca_forward(x, conv_weight, b=b, max_fused_block_bytes=0, hw_tile=128))
    assert jnp.allclose(out_tiled, ref, atol=tol, rtol=tol), "2-pass (hw-tiled) mismatch"

    print("KERNEL_OK")
</pallas_src>

<mosaic_0001>
module attributes {stable_mosaic.version = 11 : i64} {
  func.func @_eca_fused_kernel(%arg0: i32, %arg1: memref<1x8x256xf32, #tpu.memory_space<vmem>>, %arg2: memref<8x8xf32, #tpu.memory_space<vmem>>, %arg3: memref<1x8x256xf32, #tpu.memory_space<vmem>>) attributes {dimension_semantics = [#tpu.dimension_semantics<parallel>], iteration_bounds = array<i64: 2>, scalar_prefetch = 0 : i64, scratch_operands = 0 : i64, tpu.core_type = #tpu.core_type<tc>, window_params = [{transform_indices = @transform_0, window_bounds = array<i64: 1, 8, 256>}, {pipeline_mode = #tpu.pipeline_mode<synchronous>, transform_indices = @transform_1, window_bounds = array<i64: 8, 8>}, {transform_indices = @transform_2, window_bounds = array<i64: 1, 8, 256>}]} {
    %c0 = arith.constant 0 : index
    %c0_0 = arith.constant 0 : index
    %c0_1 = arith.constant 0 : index
    %0 = vector.load %arg1[%c0, %c0_0, %c0_1] : memref<1x8x256xf32, #tpu.memory_space<vmem>>, vector<1x8x256xf32>
    %cst = arith.constant dense<0.000000e+00> : vector<1x8xf32>
    %1 = vector.multi_reduction <add>, %0, %cst [2] : vector<1x8x256xf32> to vector<1x8xf32>
    %cst_2 = arith.constant 2.560000e+02 : f32
    %2 = vector.broadcast %cst_2 : f32 to vector<1x8xf32>
    %3 = arith.divf %1, %2 : vector<1x8xf32>
    %c0_3 = arith.constant 0 : index
    %c0_4 = arith.constant 0 : index
    %4 = vector.load %arg2[%c0_3, %c0_4] : memref<8x8xf32, #tpu.memory_space<vmem>>, vector<8x8xf32>
    %cst_5 = arith.constant dense<0.000000e+00> : vector<1x8xf32>
    %5 = tpu.matmul %3, %4, %cst_5 {dimension_numbers = #tpu.dot_dimension_numbers<[1], [0], [0], [1], [0, 0, 1, 1], [], []>} : vector<1x8xf32>, vector<8x8xf32>, vector<1x8xf32> -> vector<1x8xf32>
    %6 = arith.negf %5 : vector<1x8xf32>
    %7 = math.exp %6 : vector<1x8xf32>
    %cst_6 = arith.constant 1.000000e+00 : f32
    %8 = vector.broadcast %cst_6 : f32 to vector<1x8xf32>
    %9 = arith.addf %8, %7 : vector<1x8xf32>
    %10 = arith.divf %8, %9 : vector<1x8xf32>
    %cst_7 = arith.constant 1.000000e+00 : f32
    %11 = vector.broadcast %cst_7 : f32 to vector<1x8xf32>
    %12 = arith.addf %11, %10 : vector<1x8xf32>
    %c0_8 = arith.constant 0 : index
    %c0_9 = arith.constant 0 : index
    %c0_10 = arith.constant 0 : index
    %13 = vector.load %arg1[%c0_8, %c0_9, %c0_10] : memref<1x8x256xf32, #tpu.memory_space<vmem>>, vector<1x8x256xf32>
    %14 = vector.shape_cast %12 : vector<1x8xf32> to vector<1x8x1xf32>
    %15 = vector.broadcast %14 : vector<1x8x1xf32> to vector<1x8x256xf32>
    %16 = arith.mulf %13, %15 : vector<1x8x256xf32>
    %c0_11 = arith.constant 0 : index
    %c0_12 = arith.constant 0 : index
    %c0_13 = arith.constant 0 : index
    %17 = vector.load %arg3[%c0_11, %c0_12, %c0_13] : memref<1x8x256xf32, #tpu.memory_space<vmem>>, vector<1x8x256xf32>
    tpu.vector_store %arg3[%c0_11, %c0_12, %c0_13], %16 {strides = array<i32>} : memref<1x8x256xf32, #tpu.memory_space<vmem>>, vector<1x8x256xf32>,
    return
  }
  func.func @transform_0(%arg0: i32) -> (i32, i32, i32) {
    %c0_i32 = arith.constant 0 : i32
    %c0_i32_0 = arith.constant 0 : i32
    %c0_i32_1 = arith.constant 0 : i32
    return %arg0, %c0_i32, %c0_i32_0 : i32, i32, i32
  }
  func.func @transform_1(%arg0: i32) -> (i32, i32) {
    %c0_i32 = arith.constant 0 : i32
    %c0_i32_0 = arith.constant 0 : i32
    %c0_i32_1 = arith.constant 0 : i32
    return %c0_i32, %c0_i32_0 : i32, i32
  }
  func.func @transform_2(%arg0: i32) -> (i32, i32, i32) {
    %c0_i32 = arith.constant 0 : i32
    %c0_i32_0 = arith.constant 0 : i32
    %c0_i32_1 = arith.constant 0 : i32
    return %arg0, %c0_i32, %c0_i32_0 : i32, i32, i32
  }
}

</mosaic_0001>

<llo_original>
// kernel: tpu_custom_call.1
$region0: #{tpu_custom_call.1}
  #allocation0 [shape = 'u32[]', space=smem, size = 0x4, offset = 0x4, fixed_abs, tag = 'smem constant byte address 0x4 - core index']
  #allocation1 [shape = 'u32[144,128]{1,0:T(1,128)}', space=vmem, size = 0x12000, scoped, tag = 'internal scratch']
  %s0 = inlined_call_operand.hbm [shape: f32[2,8,256], index: 0, kind: input, shape index: {}]
  %s1 = inlined_call_operand.hbm [shape: f32[8,8], index: 1, kind: input, shape index: {}]
  %s2 = inlined_call_operand.hbm [shape: f32[2,8,256], index: 2, kind: output, shape index: {}]
  %s3 = sld [smem:[#allocation0]]
  $region49: #{tpu_custom_call.1} parent=0
    _
  %s5 = ssub.s32 1, %s3
  %s6 = scalar_select 0, %s5, %s3
  $region1: #{tpu_custom_call.1} parent=0
    #allocation2 [shape = 'u8[16384]{0}', space=vmem, size = 0x4000, scoped, tag = 'input window, operand 0']
    #allocation3 [shape = 's32[2]{0}', space=sflag, size = 0x8, scoped, tag = 'scoped memory for tpu_custom_call.1']
    #allocation4 [shape = 's32[2]{0}', space=sflag, size = 0x8, scoped, tag = 'scoped memory for tpu_custom_call.1']
    #allocation5 [shape = 'u8[4096]{0}', space=vmem, size = 0x1000, scoped, tag = 'input window, operand 1, single buffered']
    #allocation6 [shape = 's32[1]{0}', space=sflag, size = 0x4, scoped, tag = 'scoped memory for tpu_custom_call.1']
    #allocation7 [shape = 'u8[16384]{0}', space=vmem, size = 0x4000, scoped, tag = 'output window, operand 0']
    %7 = vsyncpa [#allocation3], 0
    %s8 = scalar_lea.sflag [#allocation3], 1
    %9 = vsyncpa %s8, 0
    %10 = vsyncpa [#allocation6], 0
    %11 = vsyncpa [#allocation4], 0
    %s12 = scalar_lea.sflag [#allocation4], 1
    %13 = vsyncpa %s12, 0
    loop: start=0, step=1, limit=4
    $region2: #{tpu_custom_call.1} parent=1 // loop_pre_header
      _
    $region3: #{tpu_custom_call.1} parent=1 // loop_header
      %s15 = sphi 0, %s19
      %p16 = scmp.ge.s32.totalorder %s15, 4
      %s25 = sphi 0, %s27
      %s28 = sphi 0, %s25
      %s29 = sphi 0, %s28
      %s45 = sphi 0, %s29
      %s49 = sphi 0, %s49
      %s51 = sphi 0, %s49
      %s52 = sphi 0, %s51
      %s66 = sphi 0, %s52
      %s72 = sphi 0, %s74
      %s75 = sphi 0, %s72
      %s76 = sphi 0, %s75
      %s92 = sphi 0, %s76
    $region4: #{tpu_custom_call.1} parent=1 // loop_header_branch
      %18 = sbr.rel (%p16) target = $region8
    $region5: #{tpu_custom_call.1} parent=1 // loop_body
      %s20 = ssub.s32 %s15, 1
      %s21 = ssub.s32 %s15, 2
      %s22 = sadd.s32 %s15, 1
      %s23 = ssub.s32 %s15, %s22
      %p24 = scmp.eq.s32.totalorder %s23, 0
      %s26 = sadd.s32 %s25, 1
      %s27 = scalar_select %p24, %s25, %s26
      %p30 = pneg %p24
      %p31 = scmp.eq.s32.totalorder %s15, 1
      %p32 = por %p30, %p31
      %p33 = scmp.ne.s32.totalorder %s25, %s28
      %p34 = scmp.eq.s32.totalorder %s15, 0
      %p35 = por %p33, %p34
      %p36 = scmp.ne.s32.totalorder %s25, %s28
      %p37 = scmp.eq.s32.totalorder %s20, 1
      %p38 = por %p36, %p37
      %p39 = scmp.ne.s32.totalorder %s28, %s29
      %p40 = scmp.eq.s32.totalorder %s20, 0
      %p41 = por %p39, %p40
      %p42 = scmp.ne.s32.totalorder %s28, %s29
      %p43 = scmp.eq.s32.totalorder %s21, 1
      %p44 = por %p42, %p43
      %p46 = scmp.ne.s32.totalorder %s29, %s45
      %p47 = scmp.eq.s32.totalorder %s21, 0
      %p48 = por %p46, %p47
      %s50 = sadd.s32 %s49, 1
      %p53 = scmp.eq.s32.totalorder %s15, 1
      %p54 = scmp.ne.s32.totalorder %s49, %s51
      %p55 = scmp.eq.s32.totalorder %s15, 0
      %p56 = por %p54, %p55
      %p57 = scmp.ne.s32.totalorder %s49, %s51
      %p58 = scmp.eq.s32.totalorder %s20, 1
      %p59 = por %p57, %p58
      %p60 = scmp.ne.s32.totalorder %s51, %s52
      %p61 = scmp.eq.s32.totalorder %s20, 0
      %p62 = por %p60, %p61
      %p63 = scmp.ne.s32.totalorder %s51, %s52
      %p64 = scmp.eq.s32.totalorder %s21, 1
      %p65 = por %p63, %p64
      %p67 = scmp.ne.s32.totalorder %s52, %s66
      %p68 = scmp.eq.s32.totalorder %s21, 0
      %p69 = por %p67, %p68
      %s70 = ssub.s32 %s15, %s22
      %p71 = scmp.eq.s32.totalorder %s70, 0
      %s73 = sadd.s32 %s72, 1
      %s74 = scalar_select %p71, %s72, %s73
      %p77 = pneg %p71
      %p78 = scmp.eq.s32.totalorder %s15, 1
      %p79 = por %p77, %p78
      %p80 = scmp.ne.s32.totalorder %s72, %s75
      %p81 = scmp.eq.s32.totalorder %s15, 0
      %p82 = por %p80, %p81
      %p83 = scmp.ne.s32.totalorder %s72, %s75
      %p84 = scmp.eq.s32.totalorder %s20, 1
      %p85 = por %p83, %p84
      %p86 = scmp.ne.s32.totalorder %s75, %s76
      %p87 = scmp.eq.s32.totalorder %s20, 0
      %p88 = por %p86, %p87
      %p89 = scmp.ne.s32.totalorder %s75, %s76
      %p90 = scmp.eq.s32.totalorder %s21, 1
      %p91 = por %p89, %p90
      %p93 = scmp.ne.s32.totalorder %s76, %s92
      %p94 = scmp.eq.s32.totalorder %s21, 0
      %p95 = por %p93, %p94
      %p96 = scmp.le.s32.totalorder 1, %s15
      %p97 = scmp.lt.s32.totalorder %s15, 3
      %p98 = pnand %p96, %p97
      %p99 = pneg %p98
      // Predicated region
      $region9: #{tpu_custom_call.1} parent=5 // pred_check
        _
      $region10: #{tpu_custom_call.1} parent=5 // pred_check_branch
        %101 = sbr.rel (%p98) target = $region12
      $region11: #{tpu_custom_call.1} parent=5 // pred_region
        %s102 = ssub.s32 %s15, 1
        // Predicated region
        $region13: #{tpu_custom_call.1} parent=11 // pred_check
          %p103 = pneg %p62
        $region14: #{tpu_custom_call.1} parent=11 // pred_check_branch
          %105 = sbr.rel (%p103) target = $region16
        $region15: #{tpu_custom_call.1} parent=11 // pred_region
          %s107 = ssub.s32 128, 128
          %108 = vsyncadd [#allocation6], %s107
          %s110 = sshll.u32 [#allocation5], 4
          %s111 = int_to_ptr.vmem [resolvable:$true] %s110
          %113 = dma.hbm_to_vmem [thread:$0]  %s1, 128, %s111, [#allocation6]
        $region16: #{tpu_custom_call.1} parent=11 // pred_fallthru
          _
      $region12: #{tpu_custom_call.1} parent=5 // pred_fallthru
        _
      %p114 = scmp.lt.s32.totalorder %s15, 2
      // Predicated region
      $region17: #{tpu_custom_call.1} parent=5 // pred_check
        %p115 = pneg %p114
      $region18: #{tpu_custom_call.1} parent=5 // pred_check_branch
        %117 = sbr.rel (%p115) target = $region20
      $region19: #{tpu_custom_call.1} parent=5 // pred_region
        // Predicated region
        $region21: #{tpu_custom_call.1} parent=19 // pred_check
          %p118 = pneg %p35
        $region22: #{tpu_custom_call.1} parent=19 // pred_check_branch
          %120 = sbr.rel (%p118) target = $region24
        $region23: #{tpu_custom_call.1} parent=19 // pred_region
          %s121 = sand.u32 %s25, 1
          %s122 = scalar_lea.sflag [#allocation3], %s121
          %s123 = sand.u32 %s25, 1
          %s124 = smul.addr %s123, 16
          %s125 = scalar_lea.vmem [#allocation2], %s124
          %s127 = ssub.s32 256, 256
          %128 = vsyncadd %s122, %s127
          %s129 = smul.addr %s15, 2
          %s130 = smul.addr %s129, 128
          %s131 = scalar_lea.hbm %s0, %s130
          %s133 = sshll.u32 %s125, 4
          %s134 = int_to_ptr.vmem [resolvable:$true] %s133
          %136 = dma.hbm_to_vmem [thread:$0]  %s131, 256, %s134, %s122
        $region24: #{tpu_custom_call.1} parent=19 // pred_fallthru
          _
      $region20: #{tpu_custom_call.1} parent=5 // pred_fallthru
        _
      %p137 = scmp.le.s32.totalorder 1, %s15
      %p138 = scmp.lt.s32.totalorder %s15, 3
      %p139 = pnand %p137, %p138
      %p140 = pneg %p139
      // Predicated region
      $region25: #{tpu_custom_call.1} parent=5 // pred_check
        _
      $region26: #{tpu_custom_call.1} parent=5 // pred_check_branch
        %142 = sbr.rel (%p139) target = $region28
      $region27: #{tpu_custom_call.1} parent=5 // pred_region
        %s143 = ssub.s32 %s15, 1
        %s144 = sand.u32 %s28, 1
        %s145 = scalar_lea.sflag [#allocation3], %s144
        %s146 = sand.u32 %s28, 1
        %s147 = smul.addr %s146, 16
        %s148 = scalar_lea.vmem [#allocation2], %s147
        // Predicated region
        $region29: #{tpu_custom_call.1} parent=27 // pred_check
          %p149 = pneg %p41
        $region30: #{tpu_custom_call.1} parent=27 // pred_check_branch
          %151 = sbr.rel (%p149) target = $region32
        $region31: #{tpu_custom_call.1} parent=27 // pred_region
          %152 = dma.done %s145, 256
        $region32: #{tpu_custom_call.1} parent=27 // pred_fallthru
          _
        // Predicated region
        $region33: #{tpu_custom_call.1} parent=27 // pred_check
          %p153 = pneg %p62
        $region34: #{tpu_custom_call.1} parent=27 // pred_check_branch
          %155 = sbr.rel (%p153) target = $region36
        $region35: #{tpu_custom_call.1} parent=27 // pred_region
          %156 = dma.done [#allocation6], 128
        $region36: #{tpu_custom_call.1} parent=27 // pred_fallthru
          _
        %s157 = sand.u32 %s28, 1
        %s158 = scalar_lea.sflag [#allocation3], %s157
        %s159 = sand.u32 %s28, 1
        %s160 = smul.addr %s159, 16
        %s161 = scalar_lea.vmem [#allocation2], %s160
        %p162 = pneg %p41
        %p163 = pneg %p38
        %p164 = pneg %p62
        %p165 = pneg %p59
        %p166 = pneg %p88
        %p167 = pneg %p85
        %s168 = sand.u32 %s75, 1
        %s169 = scalar_lea.sflag [#allocation4], %s168
        %s170 = sand.u32 %s75, 1
        %s171 = smul.addr %s170, 16
        %s172 = scalar_lea.vmem [#allocation7], %s171
        %v173 = vld [vmem:[%s148] sm:$0xff]
        %v174 = vld [vmem:[%s148 + $0x8] sm:$0xff]
        %v175 = vadd.f32 %v173, %v174
        %176 = vadd.xlane.f32.xlu0 %v175
        %v177 = vpop.xlane.xlu0 %176
        %v178 = vrcp.pop 256.0
        %v179 = vmul.f32 %v177, %v178
        %v180 = vld [vmem:[#allocation5] sm:$0xff]
        %v182 = vlaneseq
        %v183 = vand.u32 %v182, 127
        %v184 = vlaneseq
        %v185 = vshrl.u32 %v184, 7
        %v186 = vsub.s32 %v183, %v185
        %v187 = vrot.slane %v179, %v186
        %vm188 = vcmask 64512
        %v189 = vsel %vm188, %v187, 0
        %191 = vmatprep.subr.mxu0 0.0
        %192 = vmatpush1.msra.mxu0 %v180
        %193 = vmatprep.subr.mxu0 0.0
        %194 = vmatpush1.msra.mxu0 0.0
        %195 = vmatprep.subr.mxu0 0.0
        %196 = vmatpush1.msra.mxu0 0.0
        %197 = vmatprep.subr.mxu0 0.0
        %198 = vmatpush1.msra.mxu0 0.0
        %199 = vmatprep.subr.mxu0 0.0
        %200 = vmatpush1.msra.mxu0 0.0
        %201 = vmatprep.subr.mxu0 0.0
        %202 = vmatpush1.msra.mxu0 0.0
        %203 = vmatprep.subr.mxu0 0.0
        %204 = vmatpush1.msra.mxu0 0.0
        %205 = vmatprep.subr.mxu0 0.0
        %206 = vmatpush1.msra.mxu0 0.0
        %207 = vmatprep.subr.mxu0 0.0
        %208 = vmatpush1.msra.mxu0 0.0
        %209 = vmatprep.subr.mxu0 0.0
        %210 = vmatpush1.msra.mxu0 0.0
        %211 = vmatprep.subr.mxu0 0.0
        %212 = vmatpush1.msra.mxu0 0.0
        %213 = vmatprep.subr.mxu0 0.0
        %214 = vmatpush1.msra.mxu0 0.0
        %215 = vmatprep.subr.mxu0 0.0
        %216 = vmatpush1.msra.mxu0 0.0
        %217 = vmatprep.subr.mxu0 0.0
        %218 = vmatpush1.msra.mxu0 0.0
        %219 = vmatprep.subr.mxu0 0.0
        %220 = vmatpush1.msra.mxu0 0.0
        %221 = vmatprep.subr.mxu0 0.0
        %222 = vmatpush1.msra.mxu0 0.0
        %223 = vmatprep.subr.mxu0 0.0
        %224 = vmatpush1.msra.mxu0 0.0
        %225 = vmatprep.subr.mxu0 0.0
        %226 = vmatpush1.msra.mxu0 0.0
        %227 = vmatprep.subr.mxu0 0.0
        %228 = vmatpush1.msra.mxu0 0.0
        %229 = vmatprep.subr.mxu0 0.0
        %230 = vmatpush1.msra.mxu0 0.0
        %231 = vmatprep.subr.mxu0 0.0
        %232 = vmatpush1.msra.mxu0 0.0
        %233 = vmatprep.subr.mxu0 0.0
        %234 = vmatpush1.msra.mxu0 0.0
        %235 = vmatprep.subr.mxu0 0.0
        %236 = vmatpush1.msra.mxu0 0.0
        %237 = vmatprep.subr.mxu0 0.0
        %238 = vmatpush1.msra.mxu0 0.0
        %239 = vmatprep.subr.mxu0 0.0
        %240 = vmatpush1.msra.mxu0 0.0
        %241 = vmatprep.subr.mxu0 0.0
        %242 = vmatpush1.msra.mxu0 0.0
        %243 = vmatprep.subr.mxu0 0.0
        %244 = vmatpush1.msra.mxu0 0.0
        %245 = vmatprep.subr.mxu0 0.0
        %246 = vmatpush1.msra.mxu0 0.0
        %247 = vmatprep.subr.mxu0 0.0
        %248 = vmatpush1.msra.mxu0 0.0
        %249 = vmatprep.subr.mxu0 0.0
        %250 = vmatpush1.msra.mxu0 0.0
        %251 = vmatprep.subr.mxu0 0.0
        %252 = vmatpush1.msra.mxu0 0.0
        %253 = vmatprep.subr.mxu0 0.0
        %254 = vmatpush1.msra.mxu0 0.0
        %255 = vmatprep.mubr.f32.mxu0 0.0
        %256 = vmatmul.mubr.f32.gmra.mrb[0].mxu0 %v189
        %v257 = vpop.f32.mrb[0].mxu0
        %v258 = vadd.f32 0.0, %v257
        %v259 = vpop.f32.mrb[0].mxu0
        %260 = vdwg.mxu0
        %v261 = vxor.u32 %v258, 2147483648
        %v262 = vmul.f32 %v261, 1.442695
        %v263 = vpow.pop %v262
        %v264 = vadd.f32 %v263, 1.0
        %v265 = vrcp.pop %v264
        %v266 = vmul.f32 1.0, %v265
        %v267 = vadd.f32 %v266, 1.0
        %v268 = vlaneseq
        %v269 = vshrl.u32 %v268, 7
        %v270 = vsub.s32 0, %v269
        %v271 = vrot.slane %v267, %v270
        %273 = vbcast.lane.b32.xlu0 %v271, 256
        %v274 = vpop.permute.xlu0 %273
        %v275 = vmul.f32 %v173, %v274
        %v276 = vmul.f32 %v174, %v274
        %277 = vst [vmem:[%s172] sm:$0xff] %v275
        %278 = vst [vmem:[%s172 + $0x8] sm:$0xff] %v276
        %s279 = sand.u32 %s75, 1
        %s280 = scalar_lea.sflag [#allocation4], %s279
        %s281 = sand.u32 %s75, 1
        %s282 = smul.addr %s281, 16
        %s283 = scalar_lea.vmem [#allocation7], %s282
        // Predicated region
        $region37: #{tpu_custom_call.1} parent=27 // pred_check
          %p284 = pneg %p85
        $region38: #{tpu_custom_call.1} parent=27 // pred_check_branch
          %286 = sbr.rel (%p284) target = $region40
        $region39: #{tpu_custom_call.1} parent=27 // pred_region
          %s288 = ssub.s32 256, 256
          %289 = vsyncadd %s280, %s288
          %s290 = smul.addr %s20, 2
          %s291 = smul.addr %s290, 128
          %s292 = scalar_lea.hbm %s2, %s291
          %s294 = sshll.u32 %s283, 4
          %s295 = int_to_ptr.vmem [resolvable:$true] %s294
          %297 = dma.vmem_to_hbm [thread:$0]  %s295, 256, %s292, %s280
        $region40: #{tpu_custom_call.1} parent=27 // pred_fallthru
          _
      $region28: #{tpu_custom_call.1} parent=5 // pred_fallthru
        _
      %p298 = scmp.le.s32.totalorder 2, %s15
      // Predicated region
      $region41: #{tpu_custom_call.1} parent=5 // pred_check
        %p299 = pneg %p298
      $region42: #{tpu_custom_call.1} parent=5 // pred_check_branch
        %301 = sbr.rel (%p299) target = $region44
      $region43: #{tpu_custom_call.1} parent=5 // pred_region
        %s302 = ssub.s32 %s15, 2
        // Predicated region
        $region45: #{tpu_custom_call.1} parent=43 // pred_check
          %p303 = pneg %p91
        $region46: #{tpu_custom_call.1} parent=43 // pred_check_branch
          %305 = sbr.rel (%p303) target = $region48
        $region47: #{tpu_custom_call.1} parent=43 // pred_region
          %s306 = sand.u32 %s76, 1
          %s307 = scalar_lea.sflag [#allocation4], %s306
          %s308 = sand.u32 %s76, 1
          %s309 = smul.addr %s308, 16
          %s310 = scalar_lea.vmem [#allocation7], %s309
          %311 = dma.done %s307, 256
        $region48: #{tpu_custom_call.1} parent=43 // pred_fallthru
          _
      $region44: #{tpu_custom_call.1} parent=5 // pred_fallthru
        _
    $region6: #{tpu_custom_call.1} parent=1 // loop_footer
      %s19 = sadd.s32 1, %s15
    $region7: #{tpu_custom_call.1} parent=1 // loop_footer_branch
      %14 = sbr.rel target = $region3
    $region8: #{tpu_custom_call.1} parent=1 // loop_exit
      _
    %312 = vsyncpa [#allocation3], 1
    %s313 = scalar_lea.sflag [#allocation3], 1
    %314 = vsyncpa %s313, 1
    %315 = vsyncpa [#allocation6], 1
    %316 = vsyncpa [#allocation4], 1
    %s317 = scalar_lea.sflag [#allocation4], 1
    %318 = vsyncpa %s317, 1

</llo_original>
